<compile_context>
chip_gen: v7x
topology: tpu7x:2x2x1
jax: 0.10.0
libtpu: 0.0.40
codegen_flags: <defaults>
</compile_context>

<pallas_src>
import functools

import jax
import jax.numpy as jnp
from jax.experimental import pallas as pl
from jax.experimental.pallas import tpu as pltpu


def _round_up(x, m):
    return (x + m - 1) // m * m


def actor_kernel(x_ref, w1_ref, b1_ref, w2_ref, b2_ref, w3_ref, b3_ref,
                 out_ref, *, n_actions):
    # fc1 + ReLU  (bf16 inputs, f32 accumulation on the MXU)
    x = x_ref[...]
    h1 = jnp.dot(x, w1_ref[...], preferred_element_type=jnp.float32) + b1_ref[...]
    h1 = jnp.maximum(h1, 0.0).astype(w2_ref.dtype)
    # fc2 + ReLU
    h2 = jnp.dot(h1, w2_ref[...], preferred_element_type=jnp.float32) + b2_ref[...]
    h2 = jnp.maximum(h2, 0.0).astype(w3_ref.dtype)
    # output layer (lane-padded to 128 action columns)
    logits = jnp.dot(h2, w3_ref[...], preferred_element_type=jnp.float32) + b3_ref[...]
    # mask padded action columns so they carry zero probability mass
    lane = jax.lax.broadcasted_iota(jnp.int32, logits.shape, dimension=1)
    logits = jnp.where(lane < n_actions, logits, -1e30)
    # numerically-stable softmax over the last axis
    m = jnp.max(logits, axis=-1, keepdims=True)
    e = jnp.exp(logits - m)
    denom = jnp.sum(e, axis=-1, keepdims=True)
    out_ref[...] = e * pl.reciprocal(denom, approx=True)


def actor_forward(state, w1, b1, w2, b2, w3, b3, *, tile_b=256):
    """Full actor MLP + softmax in one batch-tiled Pallas kernel.

    Weights stay resident in VMEM across grid steps; only the (TILE_B, D)
    activation tile and the (TILE_B, 128) lane-dense output tile stream.
    TILE_B=256 fills the 256-wide MXU on v6e/v7x (128-multiple also fine on
    v5e) while keeping per-step VMEM well under v7x's 32 MiB scoped default.
    """
    B, D = state.shape
    F1 = w1.shape[1]
    F2 = w2.shape[1]
    A = w3.shape[1]
    A_pad = _round_up(A, 128)

    tile_b = max(8, min(tile_b, _round_up(B, 8)))
    tile_b = _round_up(tile_b, 8)
    B_pad = _round_up(B, tile_b)

    bf16, f32 = jnp.bfloat16, jnp.float32
    # bf16 MXU inputs; biases stay f32 (added after f32 accumulation).
    x = jnp.zeros((B_pad, D), bf16).at[:B].set(state.astype(bf16))
    w1b = w1.astype(bf16)
    w2b = w2.astype(bf16)
    w3b = jnp.zeros((F2, A_pad), bf16).at[:, :A].set(w3.astype(bf16))
    b1f = b1.reshape(1, F1).astype(f32)
    b2f = b2.reshape(1, F2).astype(f32)
    b3f = jnp.zeros((1, A_pad), f32).at[:, :A].set(b3.reshape(1, A).astype(f32))

    def resident(shape):
        return pl.BlockSpec(shape, lambda i: (0, 0))

    cost = pl.CostEstimate(
        flops=2 * B_pad * (D * F1 + F1 * F2 + F2 * A_pad),
        transcendentals=B_pad * A_pad,
        bytes_accessed=(2 * (x.size + w1b.size + w2b.size + w3b.size)
                        + 4 * (b1f.size + b2f.size + b3f.size)
                        + 4 * B_pad * A_pad),
    )

    out = pl.pallas_call(
        functools.partial(actor_kernel, n_actions=A),
        out_shape=jax.ShapeDtypeStruct((B_pad, A_pad), f32),
        grid=(B_pad // tile_b,),
        in_specs=[
            pl.BlockSpec((tile_b, D), lambda i: (i, 0)),   # streamed activations
            resident((D, F1)), resident((1, F1)),          # fc1
            resident((F1, F2)), resident((1, F2)),         # fc2
            resident((F2, A_pad)), resident((1, A_pad)),   # output layer (padded)
        ],
        out_specs=pl.BlockSpec((tile_b, A_pad), lambda i: (i, 0)),
        compiler_params=pltpu.CompilerParams(
            dimension_semantics=("parallel",)),
        cost_estimate=cost,
    )(x, w1b, b1f, w2b, b2f, w3b, b3f)
    return out[:B, :A]


def init_linear_params(key, fan_in, fan_out):
    """Deterministic init mimicking torch.nn.Linear (uniform +-1/sqrt(fan_in))."""
    kw, kb = jax.random.split(key)
    bound = 1.0 / jnp.sqrt(float(fan_in))
    # stored as (in, out) so the kernel computes x @ W
    w = jax.random.uniform(kw, (fan_in, fan_out), jnp.float32, -bound, bound)
    b = jax.random.uniform(kb, (1, fan_out), jnp.float32, -bound, bound)
    return w, b


def ref_forward(state, w1, b1, w2, b2, w3, b3):
    """Pure-JAX reference with the same bf16-in / f32-accumulate behavior."""
    bf16, f32 = jnp.bfloat16, jnp.float32
    x = state.astype(bf16).astype(f32)
    h1 = jnp.maximum(x @ w1.astype(bf16).astype(f32) + b1, 0.0)
    h1 = h1.astype(bf16).astype(f32)
    h2 = jnp.maximum(h1 @ w2.astype(bf16).astype(f32) + b2, 0.0)
    h2 = h2.astype(bf16).astype(f32)
    logits = h2 @ w3.astype(bf16).astype(f32) + b3
    return jax.nn.softmax(logits, axis=-1)


if __name__ == "__main__":
    # Small shapes consistent with the module defaults (fc1=fc2=256).
    batch = 8
    input_dims = 8        # e.g. an 8-dim observation vector
    fc1_dims = 256
    fc2_dims = 256
    n_actions = 4

    key = jax.random.PRNGKey(0)
    k_x, k1, k2, k3 = jax.random.split(key, 4)

    state = jax.random.normal(k_x, (batch, input_dims), jnp.float32)
    w1, b1 = init_linear_params(k1, input_dims, fc1_dims)
    w2, b2 = init_linear_params(k2, fc1_dims, fc2_dims)
    w3, b3 = init_linear_params(k3, fc2_dims, n_actions)

    probs = actor_forward(state, w1, b1, w2, b2, w3, b3)
    probs = jax.block_until_ready(probs)

    ref = ref_forward(state, w1, b1, w2, b2, w3, b3)

    assert probs.shape == (batch, n_actions)
    assert jnp.allclose(jnp.sum(probs, axis=-1), 1.0, atol=1e-2)
    assert jnp.allclose(probs, ref, atol=1e-2, rtol=1e-2)

    # TODO(synk): Categorical(dist) sampling/log_prob lives outside the hot
    # path; the kernel returns the probability matrix that parameterizes it.
    print("KERNEL_OK")
</pallas_src>

<mosaic_0001>
module attributes {stable_mosaic.version = 11 : i64} {
  func.func @actor_kernel(%arg0: i32, %arg1: memref<8x8xbf16, #tpu.memory_space<vmem>>, %arg2: memref<8x256xbf16, #tpu.memory_space<vmem>>, %arg3: memref<1x256xf32, #tpu.memory_space<vmem>>, %arg4: memref<256x256xbf16, #tpu.memory_space<vmem>>, %arg5: memref<1x256xf32, #tpu.memory_space<vmem>>, %arg6: memref<256x128xbf16, #tpu.memory_space<vmem>>, %arg7: memref<1x128xf32, #tpu.memory_space<vmem>>, %arg8: memref<8x128xf32, #tpu.memory_space<vmem>>) attributes {dimension_semantics = [#tpu.dimension_semantics<parallel>], iteration_bounds = array<i64: 1>, scalar_prefetch = 0 : i64, scratch_operands = 0 : i64, tpu.core_type = #tpu.core_type<tc>, window_params = [{transform_indices = @transform_0, window_bounds = array<i64: 8, 8>}, {pipeline_mode = #tpu.pipeline_mode<synchronous>, transform_indices = @transform_1, window_bounds = array<i64: 8, 256>}, {pipeline_mode = #tpu.pipeline_mode<synchronous>, transform_indices = @transform_2, window_bounds = array<i64: 1, 256>}, {pipeline_mode = #tpu.pipeline_mode<synchronous>, transform_indices = @transform_3, window_bounds = array<i64: 256, 256>}, {pipeline_mode = #tpu.pipeline_mode<synchronous>, transform_indices = @transform_4, window_bounds = array<i64: 1, 256>}, {pipeline_mode = #tpu.pipeline_mode<synchronous>, transform_indices = @transform_5, window_bounds = array<i64: 256, 128>}, {pipeline_mode = #tpu.pipeline_mode<synchronous>, transform_indices = @transform_6, window_bounds = array<i64: 1, 128>}, {transform_indices = @transform_7, window_bounds = array<i64: 8, 128>}]} {
    %c0 = arith.constant 0 : index
    %c0_0 = arith.constant 0 : index
    %0 = vector.load %arg1[%c0, %c0_0] : memref<8x8xbf16, #tpu.memory_space<vmem>>, vector<8x8xbf16>
    %c0_1 = arith.constant 0 : index
    %c0_2 = arith.constant 0 : index
    %1 = vector.load %arg2[%c0_1, %c0_2] : memref<8x256xbf16, #tpu.memory_space<vmem>>, vector<8x256xbf16>
    %cst = arith.constant dense<0.000000e+00> : vector<8x256xf32>
    %2 = tpu.matmul %0, %1, %cst {dimension_numbers = #tpu.dot_dimension_numbers<[1], [0], [0], [1], [0, 0, 1, 1], [], []>} : vector<8x8xbf16>, vector<8x256xbf16>, vector<8x256xf32> -> vector<8x256xf32>
    %c0_3 = arith.constant 0 : index
    %c0_4 = arith.constant 0 : index
    %3 = vector.load %arg3[%c0_3, %c0_4] : memref<1x256xf32, #tpu.memory_space<vmem>>, vector<1x256xf32>
    %4 = vector.broadcast %3 : vector<1x256xf32> to vector<8x256xf32>
    %5 = arith.addf %2, %4 : vector<8x256xf32>
    %cst_5 = arith.constant 0.000000e+00 : f32
    %6 = vector.broadcast %cst_5 : f32 to vector<8x256xf32>
    %7 = arith.maximumf %5, %6 : vector<8x256xf32>
    %8 = arith.truncf %7 : vector<8x256xf32> to vector<8x256xbf16>
    %c0_6 = arith.constant 0 : index
    %c0_7 = arith.constant 0 : index
    %9 = vector.load %arg4[%c0_6, %c0_7] : memref<256x256xbf16, #tpu.memory_space<vmem>>, vector<256x256xbf16>
    %cst_8 = arith.constant dense<0.000000e+00> : vector<8x256xf32>
    %10 = tpu.matmul %8, %9, %cst_8 {dimension_numbers = #tpu.dot_dimension_numbers<[1], [0], [0], [1], [0, 0, 1, 1], [], []>} : vector<8x256xbf16>, vector<256x256xbf16>, vector<8x256xf32> -> vector<8x256xf32>
    %c0_9 = arith.constant 0 : index
    %c0_10 = arith.constant 0 : index
    %11 = vector.load %arg5[%c0_9, %c0_10] : memref<1x256xf32, #tpu.memory_space<vmem>>, vector<1x256xf32>
    %12 = vector.broadcast %11 : vector<1x256xf32> to vector<8x256xf32>
    %13 = arith.addf %10, %12 : vector<8x256xf32>
    %cst_11 = arith.constant 0.000000e+00 : f32
    %14 = vector.broadcast %cst_11 : f32 to vector<8x256xf32>
    %15 = arith.maximumf %13, %14 : vector<8x256xf32>
    %16 = arith.truncf %15 : vector<8x256xf32> to vector<8x256xbf16>
    %c0_12 = arith.constant 0 : index
    %c0_13 = arith.constant 0 : index
    %17 = vector.load %arg6[%c0_12, %c0_13] : memref<256x128xbf16, #tpu.memory_space<vmem>>, vector<256x128xbf16>
    %cst_14 = arith.constant dense<0.000000e+00> : vector<8x128xf32>
    %18 = tpu.matmul %16, %17, %cst_14 {dimension_numbers = #tpu.dot_dimension_numbers<[1], [0], [0], [1], [0, 0, 1, 1], [], []>} : vector<8x256xbf16>, vector<256x128xbf16>, vector<8x128xf32> -> vector<8x128xf32>
    %c0_15 = arith.constant 0 : index
    %c0_16 = arith.constant 0 : index
    %19 = vector.load %arg7[%c0_15, %c0_16] : memref<1x128xf32, #tpu.memory_space<vmem>>, vector<1x128xf32>
    %20 = vector.broadcast %19 : vector<1x128xf32> to vector<8x128xf32>
    %21 = arith.addf %18, %20 : vector<8x128xf32>
    %22 = tpu.iota {dimensions = array<i32: 1>} : vector<8x128xi32>
    %c4_i32 = arith.constant 4 : i32
    %23 = vector.broadcast %c4_i32 : i32 to vector<8x128xi32>
    %24 = arith.cmpi slt, %22, %23 : vector<8x128xi32>
    %cst_17 = arith.constant -1.000000e+30 : f32
    %25 = vector.broadcast %cst_17 : f32 to vector<8x128xf32>
    %26 = arith.select %24, %21, %25 : vector<8x128xi1>, vector<8x128xf32>
    %cst_18 = arith.constant dense<0xFF800000> : vector<8xf32>
    %27 = vector.multi_reduction <maximumf>, %26, %cst_18 [1] : vector<8x128xf32> to vector<8xf32>
    %28 = vector.shape_cast %27 : vector<8xf32> to vector<8x1xf32>
    %29 = vector.broadcast %28 : vector<8x1xf32> to vector<8x128xf32>
    %30 = arith.subf %26, %29 : vector<8x128xf32>
    %31 = math.exp %30 : vector<8x128xf32>
    %cst_19 = arith.constant dense<0.000000e+00> : vector<8xf32>
    %32 = vector.multi_reduction <add>, %31, %cst_19 [1] : vector<8x128xf32> to vector<8xf32>
    %33 = vector.shape_cast %32 : vector<8xf32> to vector<8x1xf32>
    %34 = tpu.reciprocal %33 {approx = true} : vector<8x1xf32> -> vector<8x1xf32>
    %35 = vector.broadcast %34 : vector<8x1xf32> to vector<8x128xf32>
    %36 = arith.mulf %31, %35 : vector<8x128xf32>
    %c0_20 = arith.constant 0 : index
    %c0_21 = arith.constant 0 : index
    %37 = vector.load %arg8[%c0_20, %c0_21] : memref<8x128xf32, #tpu.memory_space<vmem>>, vector<8x128xf32>
    tpu.vector_store %arg8[%c0_20, %c0_21], %36 {strides = array<i32>} : memref<8x128xf32, #tpu.memory_space<vmem>>, vector<8x128xf32>,
    return
  }
  func.func @transform_0(%arg0: i32) -> (i32, i32) {
    %c0_i32 = arith.constant 0 : i32
    %c0_i32_0 = arith.constant 0 : i32
    return %arg0, %c0_i32 : i32, i32
  }
  func.func @transform_1(%arg0: i32) -> (i32, i32) {
    %c0_i32 = arith.constant 0 : i32
    %c0_i32_0 = arith.constant 0 : i32
    %c0_i32_1 = arith.constant 0 : i32
    return %c0_i32, %c0_i32_0 : i32, i32
  }
  func.func @transform_2(%arg0: i32) -> (i32, i32) {
    %c0_i32 = arith.constant 0 : i32
    %c0_i32_0 = arith.constant 0 : i32
    %c0_i32_1 = arith.constant 0 : i32
    return %c0_i32, %c0_i32_0 : i32, i32
  }
  func.func @transform_3(%arg0: i32) -> (i32, i32) {
    %c0_i32 = arith.constant 0 : i32
    %c0_i32_0 = arith.constant 0 : i32
    %c0_i32_1 = arith.constant 0 : i32
    return %c0_i32, %c0_i32_0 : i32, i32
  }
  func.func @transform_4(%arg0: i32) -> (i32, i32) {
    %c0_i32 = arith.constant 0 : i32
    %c0_i32_0 = arith.constant 0 : i32
    %c0_i32_1 = arith.constant 0 : i32
    return %c0_i32, %c0_i32_0 : i32, i32
  }
  func.func @transform_5(%arg0: i32) -> (i32, i32) {
    %c0_i32 = arith.constant 0 : i32
    %c0_i32_0 = arith.constant 0 : i32
    %c0_i32_1 = arith.constant 0 : i32
    return %c0_i32, %c0_i32_0 : i32, i32
  }
  func.func @transform_6(%arg0: i32) -> (i32, i32) {
    %c0_i32 = arith.constant 0 : i32
    %c0_i32_0 = arith.constant 0 : i32
    %c0_i32_1 = arith.constant 0 : i32
    return %c0_i32, %c0_i32_0 : i32, i32
  }
  func.func @transform_7(%arg0: i32) -> (i32, i32) {
    %c0_i32 = arith.constant 0 : i32
    %c0_i32_0 = arith.constant 0 : i32
    return %arg0, %c0_i32 : i32, i32
  }
}

</mosaic_0001>

<llo_original>
// kernel: tpu_custom_call.1
$region0: #{tpu_custom_call.1}
  #allocation0 [shape = 'u32[]', space=smem, size = 0x4, offset = 0x4, fixed_abs, tag = 'smem constant byte address 0x4 - core index']
  #allocation1 [shape = 'u32[144,128]{1,0:T(1,128)}', space=vmem, size = 0x12000, scoped, tag = 'internal scratch']
  %s0 = inlined_call_operand.hbm [shape: bf16[8,8], index: 0, kind: input, shape index: {}]
  %s1 = inlined_call_operand.hbm [shape: bf16[8,256], index: 1, kind: input, shape index: {}]
  %s2 = inlined_call_operand.vmem [shape: f32[1,256], index: 2, kind: input, shape index: {}]
  %s3 = inlined_call_operand.hbm [shape: bf16[256,256], index: 3, kind: input, shape index: {}]
  %s4 = inlined_call_operand.vmem [shape: f32[1,256], index: 4, kind: input, shape index: {}]
  %s5 = inlined_call_operand.hbm [shape: bf16[256,128], index: 5, kind: input, shape index: {}]
  %s6 = inlined_call_operand.vmem [shape: f32[1,128], index: 6, kind: input, shape index: {}]
  %s7 = inlined_call_operand.hbm [shape: f32[8,128], index: 7, kind: output, shape index: {}]
  %s8 = sld [smem:[#allocation0]]
  $region54: #{tpu_custom_call.1} parent=0
    _
  %s10 = ssub.s32 1, %s8
  %s11 = scalar_select 0, %s10, %s8
  $region1: #{tpu_custom_call.1} parent=0
    #allocation2 [shape = 'u8[2048]{0}', space=vmem, size = 0x800, scoped, tag = 'input window, operand 0, single buffered']
    #allocation3 [shape = 's32[1]{0}', space=sflag, size = 0x4, scoped, tag = 'scoped memory for tpu_custom_call.1']
    #allocation4 [shape = 's32[1]{0}', space=sflag, size = 0x4, scoped, tag = 'scoped memory for tpu_custom_call.1']
    #allocation5 [shape = 'u8[4096]{0}', space=vmem, size = 0x1000, scoped, tag = 'input window, operand 1, single buffered']
    #allocation6 [shape = 's32[1]{0}', space=sflag, size = 0x4, scoped, tag = 'scoped memory for tpu_custom_call.1']
    #allocation7 [shape = 'u8[131072]{0}', space=vmem, size = 0x20000, scoped, tag = 'input window, operand 3, single buffered']
    #allocation8 [shape = 'u8[65536]{0}', space=vmem, size = 0x10000, scoped, tag = 'input window, operand 5, single buffered']
    #allocation9 [shape = 's32[1]{0}', space=sflag, size = 0x4, scoped, tag = 'scoped memory for tpu_custom_call.1']
    #allocation10 [shape = 'u8[4096]{0}', space=vmem, size = 0x1000, scoped, tag = 'output window, operand 0, single buffered']
    %12 = vsyncpa [#allocation3], 0
    %13 = vsyncpa [#allocation6], 0
    %14 = vsyncpa [#allocation9], 0
    %15 = vsyncpa [#allocation4], 0
    // Predicated region
    $region2: #{tpu_custom_call.1} parent=1 // pred_check
      _
    $region3: #{tpu_custom_call.1} parent=1 // pred_check_branch
      %17 = sbr.rel (0) target = $region5
    $region4: #{tpu_custom_call.1} parent=1 // pred_region
      %s19 = ssub.s32 64, 64
      %20 = vsyncadd [#allocation3], %s19
      %s22 = sshll.u32 [#allocation2], 4
      %s23 = int_to_ptr.vmem [resolvable:$true] %s22
      %25 = dma.hbm_to_vmem [thread:$0]  %s0, 64, %s23, [#allocation3]
    $region5: #{tpu_custom_call.1} parent=1 // pred_fallthru
      _
    // Predicated region
    $region6: #{tpu_custom_call.1} parent=1 // pred_check
      _
    $region7: #{tpu_custom_call.1} parent=1 // pred_check_branch
      %27 = sbr.rel (0) target = $region9
    $region8: #{tpu_custom_call.1} parent=1 // pred_region
      %s29 = ssub.s32 128, 128
      %30 = vsyncadd [#allocation6], %s29
      %s32 = sshll.u32 [#allocation5], 4
      %s33 = int_to_ptr.vmem [resolvable:$true] %s32
      %35 = dma.hbm_to_vmem [thread:$0]  %s1, 128, %s33, [#allocation6]
    $region9: #{tpu_custom_call.1} parent=1 // pred_fallthru
      _
    // Predicated region
    $region10: #{tpu_custom_call.1} parent=1 // pred_check
      _
    $region11: #{tpu_custom_call.1} parent=1 // pred_check_branch
      %37 = sbr.rel (0) target = $region13
    $region12: #{tpu_custom_call.1} parent=1 // pred_region
      _
    $region13: #{tpu_custom_call.1} parent=1 // pred_fallthru
      _
    // Predicated region
    $region14: #{tpu_custom_call.1} parent=1 // pred_check
      _
    $region15: #{tpu_custom_call.1} parent=1 // pred_check_branch
      %39 = sbr.rel (0) target = $region17
    $region16: #{tpu_custom_call.1} parent=1 // pred_region
      %s41 = ssub.s32 4096, 4096
      %42 = vsyncadd [#allocation6], %s41
      %s43 = sshll.u32 [#allocation7], 4
      %s44 = int_to_ptr.vmem [resolvable:$true] %s43
      %49 = dma.hbm_to_vmem [thread:$0]  %s3, 4096, %s44, [#allocation6], 128, 128, 8
    $region17: #{tpu_custom_call.1} parent=1 // pred_fallthru
      _
    // Predicated region
    $region18: #{tpu_custom_call.1} parent=1 // pred_check
      _
    $region19: #{tpu_custom_call.1} parent=1 // pred_check_branch
      %51 = sbr.rel (0) target = $region21
    $region20: #{tpu_custom_call.1} parent=1 // pred_region
      _
    $region21: #{tpu_custom_call.1} parent=1 // pred_fallthru
      _
    // Predicated region
    $region22: #{tpu_custom_call.1} parent=1 // pred_check
      _
    $region23: #{tpu_custom_call.1} parent=1 // pred_check_branch
      %53 = sbr.rel (0) target = $region25
    $region24: #{tpu_custom_call.1} parent=1 // pred_region
      %s55 = ssub.s32 2048, 2048
      %56 = vsyncadd [#allocation9], %s55
      %s57 = sshll.u32 [#allocation8], 4
      %s58 = int_to_ptr.vmem [resolvable:$true] %s57
      %63 = dma.hbm_to_vmem [thread:$0]  %s5, 2048, %s58, [#allocation9], 64, 64, 4
    $region25: #{tpu_custom_call.1} parent=1 // pred_fallthru
      _
    // Predicated region
    $region26: #{tpu_custom_call.1} parent=1 // pred_check
      _
    $region27: #{tpu_custom_call.1} parent=1 // pred_check_branch
      %65 = sbr.rel (0) target = $region29
    $region28: #{tpu_custom_call.1} parent=1 // pred_region
      _
    $region29: #{tpu_custom_call.1} parent=1 // pred_fallthru
      _
    // Predicated region
    $region30: #{tpu_custom_call.1} parent=1 // pred_check
      _
    $region31: #{tpu_custom_call.1} parent=1 // pred_check_branch
      %67 = sbr.rel (0) target = $region33
    $region32: #{tpu_custom_call.1} parent=1 // pred_region
      %68 = dma.done [#allocation3], 64
    $region33: #{tpu_custom_call.1} parent=1 // pred_fallthru
      _
    // Predicated region
    $region34: #{tpu_custom_call.1} parent=1 // pred_check
      _
    $region35: #{tpu_custom_call.1} parent=1 // pred_check_branch
      %70 = sbr.rel (0) target = $region37
    $region36: #{tpu_custom_call.1} parent=1 // pred_region
      %71 = dma.done [#allocation6], 128
    $region37: #{tpu_custom_call.1} parent=1 // pred_fallthru
      _
    // Predicated region
    $region38: #{tpu_custom_call.1} parent=1 // pred_check
      _
    $region39: #{tpu_custom_call.1} parent=1 // pred_check_branch
      %73 = sbr.rel (0) target = $region41
    $region40: #{tpu_custom_call.1} parent=1 // pred_region
      %74 = dma.done [#allocation6], 4096
    $region41: #{tpu_custom_call.1} parent=1 // pred_fallthru
      _
    // Predicated region
    $region42: #{tpu_custom_call.1} parent=1 // pred_check
      _
    $region43: #{tpu_custom_call.1} parent=1 // pred_check_branch
      %76 = sbr.rel (0) target = $region45
    $region44: #{tpu_custom_call.1} parent=1 // pred_region
      %77 = dma.done [#allocation9], 2048
    $region45: #{tpu_custom_call.1} parent=1 // pred_fallthru
      _
    %v79 = vld [vmem:[#allocation2] sm:$0xf]
    %v80 = vld [vmem:[#allocation5] sm:$0xff]
    %v81 = vld [vmem:[%s2] sm:$0x3]
    %v83 = vlaneseq
    %v84 = vshrl.u32 %v83, 7
    %v85 = vsub.s32 0, %v84
    %v86 = vrot.slane %v81, %v85
    %v87 = vlaneseq
    %v88 = vshrl.u32 %v87, 7
    %v89 = vsub.s32 1, %v88
    %v90 = vrot.slane %v81, %v89
    %v94 = vunpack.c.l.b16 %v80
    %v95 = vunpack.c.h.b16 %v80
    %v96 = vpack.c.b16 %v94, %v94
    %v97 = vpack.c.b16 %v95, %v95
    %vm98 = vcmask 64512
    %v100 = vsel %vm98, %v79, 0
    %vm102 = vcmask 1043456
    %v104 = vsel %vm102, %v96, 0
    %v107 = vsel %vm102, %v97, 0
    %109 = vmatprep.subr.bf16.mxu0 %v107
    %110 = vmatpush1.bf16.msra.mxu0 %v104
    %111 = vmatprep.subr.bf16.mxu0 0
    %112 = vmatpush1.bf16.msra.mxu0 0
    %113 = vmatprep.subr.bf16.mxu0 0
    %114 = vmatpush1.bf16.msra.mxu0 0
    %115 = vmatprep.subr.bf16.mxu0 0
    %116 = vmatpush1.bf16.msra.mxu0 0
    %117 = vmatprep.subr.bf16.mxu0 0
    %118 = vmatpush1.bf16.msra.mxu0 0
    %119 = vmatprep.subr.bf16.mxu0 0
    %120 = vmatpush1.bf16.msra.mxu0 0
    %121 = vmatprep.subr.bf16.mxu0 0
    %122 = vmatpush1.bf16.msra.mxu0 0
    %123 = vmatprep.subr.bf16.mxu0 0
    %124 = vmatpush1.bf16.msra.mxu0 0
    %125 = vmatprep.subr.bf16.mxu0 0
    %126 = vmatpush1.bf16.msra.mxu0 0
    %127 = vmatprep.subr.bf16.mxu0 0
    %128 = vmatpush1.bf16.msra.mxu0 0
    %129 = vmatprep.subr.bf16.mxu0 0
    %130 = vmatpush1.bf16.msra.mxu0 0
    %131 = vmatprep.subr.bf16.mxu0 0
    %132 = vmatpush1.bf16.msra.mxu0 0
    %133 = vmatprep.subr.bf16.mxu0 0
    %134 = vmatpush1.bf16.msra.mxu0 0
    %135 = vmatprep.subr.bf16.mxu0 0
    %136 = vmatpush1.bf16.msra.mxu0 0
    %137 = vmatprep.subr.bf16.mxu0 0
    %138 = vmatpush1.bf16.msra.mxu0 0
    %139 = vmatprep.subr.bf16.mxu0 0
    %140 = vmatpush1.bf16.msra.mxu0 0
    %141 = vmatprep.mubr.bf16.mxu0 0
    %142 = vmatmul.mubr.bf16.gmra.mrb[0].mxu0 %v100
    %v143 = vpop.f32.mrb[0].mxu0
    %v144 = vadd.f32 %v86, %v143
    %v145 = vpop.f32.mrb[0].mxu0
    %v146 = vadd.f32 %v90, %v145
    %v147 = vpop.f32.mrb[0].mxu0
    %v148 = vpop.f32.mrb[0].mxu0
    %149 = vdwg.mxu0
    %v150 = vmax.f32 %v144, 0.0
    %v151 = vmax.f32 %v146, 0.0
    %v152 = vpack.c.bf16 %v150, %v150
    %v153 = vpack.c.bf16 %v151, %v151
    %v154 = vld [vmem:[#allocation7] sm:$0xff]
    %v155 = vld [vmem:[#allocation7 + $0x8] sm:$0xff]
    %v156 = vld [vmem:[#allocation7 + $0x10] sm:$0xff]
    %v157 = vld [vmem:[#allocation7 + $0x18] sm:$0xff]
    %v158 = vld [vmem:[#allocation7 + $0x20] sm:$0xff]
    %v159 = vld [vmem:[#allocation7 + $0x28] sm:$0xff]
    %v160 = vld [vmem:[#allocation7 + $0x30] sm:$0xff]
    %v161 = vld [vmem:[#allocation7 + $0x38] sm:$0xff]
    %v162 = vld [vmem:[#allocation7 + $0x40] sm:$0xff]
    %v163 = vld [vmem:[#allocation7 + $0x48] sm:$0xff]
    %v164 = vld [vmem:[#allocation7 + $0x50] sm:$0xff]
    %v165 = vld [vmem:[#allocation7 + $0x58] sm:$0xff]
    %v166 = vld [vmem:[#allocation7 + $0x60] sm:$0xff]
    %v167 = vld [vmem:[#allocation7 + $0x68] sm:$0xff]
    %v168 = vld [vmem:[#allocation7 + $0x70] sm:$0xff]
    %v169 = vld [vmem:[#allocation7 + $0x78] sm:$0xff]
    %v170 = vld [vmem:[#allocation7 + $0x80] sm:$0xff]
    %v171 = vld [vmem:[#allocation7 + $0x88] sm:$0xff]
    %v172 = vld [vmem:[#allocation7 + $0x90] sm:$0xff]
    %v173 = vld [vmem:[#allocation7 + $0x98] sm:$0xff]
    %v174 = vld [vmem:[#allocation7 + $0xa0] sm:$0xff]
    %v175 = vld [vmem:[#allocation7 + $0xa8] sm:$0xff]
    %v176 = vld [vmem:[#allocation7 + $0xb0] sm:$0xff]
    %v177 = vld [vmem:[#allocation7 + $0xb8] sm:$0xff]
    %v178 = vld [vmem:[#allocation7 + $0xc0] sm:$0xff]
    %v179 = vld [vmem:[#allocation7 + $0xc8] sm:$0xff]
    %v180 = vld [vmem:[#allocation7 + $0xd0] sm:$0xff]
    %v181 = vld [vmem:[#allocation7 + $0xd8] sm:$0xff]
    %v182 = vld [vmem:[#allocation7 + $0xe0] sm:$0xff]
    %v183 = vld [vmem:[#allocation7 + $0xe8] sm:$0xff]
    %v184 = vld [vmem:[#allocation7 + $0xf0] sm:$0xff]
    %v185 = vld [vmem:[#allocation7 + $0xf8] sm:$0xff]
    %v186 = vld [vmem:[%s4] sm:$0x3]
    %v188 = vlaneseq
    %v189 = vshrl.u32 %v188, 7
    %v190 = vsub.s32 0, %v189
    %v191 = vrot.slane %v186, %v190
    %v192 = vlaneseq
    %v193 = vshrl.u32 %v192, 7
    %v194 = vsub.s32 1, %v193
    %v195 = vrot.slane %v186, %v194
    %v230 = vunpack.c.l.b16 %v154
    %v231 = vunpack.c.h.b16 %v154
    %v232 = vunpack.c.l.b16 %v155
    %v233 = vunpack.c.h.b16 %v155
    %v234 = vunpack.c.l.b16 %v156
    %v235 = vunpack.c.h.b16 %v156
    %v236 = vunpack.c.l.b16 %v157
    %v237 = vunpack.c.h.b16 %v157
    %v238 = vunpack.c.l.b16 %v158
    %v239 = vunpack.c.h.b16 %v158
    %v240 = vunpack.c.l.b16 %v159
    %v241 = vunpack.c.h.b16 %v159
    %v242 = vunpack.c.l.b16 %v160
    %v243 = vunpack.c.h.b16 %v160
    %v244 = vunpack.c.l.b16 %v161
    %v245 = vunpack.c.h.b16 %v161
    %v246 = vunpack.c.l.b16 %v162
    %v247 = vunpack.c.h.b16 %v162
    %v248 = vunpack.c.l.b16 %v163
    %v249 = vunpack.c.h.b16 %v163
    %v250 = vunpack.c.l.b16 %v164
    %v251 = vunpack.c.h.b16 %v164
    %v252 = vunpack.c.l.b16 %v165
    %v253 = vunpack.c.h.b16 %v165
    %v254 = vunpack.c.l.b16 %v166
    %v255 = vunpack.c.h.b16 %v166
    %v256 = vunpack.c.l.b16 %v167
    %v257 = vunpack.c.h.b16 %v167
    %v258 = vunpack.c.l.b16 %v168
    %v259 = vunpack.c.h.b16 %v168
    %v260 = vunpack.c.l.b16 %v169
    %v261 = vunpack.c.h.b16 %v169
    %v262 = vunpack.c.l.b16 %v170
    %v263 = vunpack.c.h.b16 %v170
    %v264 = vunpack.c.l.b16 %v171
    %v265 = vunpack.c.h.b16 %v171
    %v266 = vunpack.c.l.b16 %v172
    %v267 = vunpack.c.h.b16 %v172
    %v268 = vunpack.c.l.b16 %v173
    %v269 = vunpack.c.h.b16 %v173
    %v270 = vunpack.c.l.b16 %v174
    %v271 = vunpack.c.h.b16 %v174
    %v272 = vunpack.c.l.b16 %v175
    %v273 = vunpack.c.h.b16 %v175
    %v274 = vunpack.c.l.b16 %v176
    %v275 = vunpack.c.h.b16 %v176
    %v276 = vunpack.c.l.b16 %v177
    %v277 = vunpack.c.h.b16 %v177
    %v278 = vunpack.c.l.b16 %v178
    %v279 = vunpack.c.h.b16 %v178
    %v280 = vunpack.c.l.b16 %v179
    %v281 = vunpack.c.h.b16 %v179
    %v282 = vunpack.c.l.b16 %v180
    %v283 = vunpack.c.h.b16 %v180
    %v284 = vunpack.c.l.b16 %v181
    %v285 = vunpack.c.h.b16 %v181
    %v286 = vunpack.c.l.b16 %v182
    %v287 = vunpack.c.h.b16 %v182
    %v288 = vunpack.c.l.b16 %v183
    %v289 = vunpack.c.h.b16 %v183
    %v290 = vunpack.c.l.b16 %v184
    %v291 = vunpack.c.h.b16 %v184
    %v292 = vunpack.c.l.b16 %v185
    %v293 = vunpack.c.h.b16 %v185
    %v294 = vpack.c.b16 %v232, %v230
    %v295 = vpack.c.b16 %v233, %v231
    %v296 = vpack.c.b16 %v236, %v234
    %v297 = vpack.c.b16 %v237, %v235
    %v298 = vpack.c.b16 %v240, %v238
    %v299 = vpack.c.b16 %v241, %v239
    %v300 = vpack.c.b16 %v244, %v242
    %v301 = vpack.c.b16 %v245, %v243
    %v302 = vpack.c.b16 %v248, %v246
    %v303 = vpack.c.b16 %v249, %v247
    %v304 = vpack.c.b16 %v252, %v250
    %v305 = vpack.c.b16 %v253, %v251
    %v306 = vpack.c.b16 %v256, %v254
    %v307 = vpack.c.b16 %v257, %v255
    %v308 = vpack.c.b16 %v260, %v258
    %v309 = vpack.c.b16 %v261, %v259
    %v310 = vpack.c.b16 %v264, %v262
    %v311 = vpack.c.b16 %v265, %v263
    %v312 = vpack.c.b16 %v268, %v266
    %v313 = vpack.c.b16 %v269, %v267
    %v314 = vpack.c.b16 %v272, %v270
    %v315 = vpack.c.b16 %v273, %v271
    %v316 = vpack.c.b16 %v276, %v274
    %v317 = vpack.c.b16 %v277, %v275
    %v318 = vpack.c.b16 %v280, %v278
    %v319 = vpack.c.b16 %v281, %v279
    %v320 = vpack.c.b16 %v284, %v282
    %v321 = vpack.c.b16 %v285, %v283
    %v322 = vpack.c.b16 %v288, %v286
    %v323 = vpack.c.b16 %v289, %v287
    %v324 = vpack.c.b16 %v292, %v290
    %v325 = vpack.c.b16 %v293, %v291
    %358 = vmatprep.subr.bf16.mxu0 %v295
    %359 = vmatpush1.bf16.msra.mxu0 %v294
    %360 = vmatprep.subr.bf16.mxu0 %v297
    %361 = vmatpush1.bf16.msra.mxu0 %v296
    %362 = vmatprep.subr.bf16.mxu0 %v299
    %363 = vmatpush1.bf16.msra.mxu0 %v298
    %364 = vmatprep.subr.bf16.mxu0 %v301
    %365 = vmatpush1.bf16.msra.mxu0 %v300
    %366 = vmatprep.subr.bf16.mxu0 %v303
    %367 = vmatpush1.bf16.msra.mxu0 %v302
    %368 = vmatprep.subr.bf16.mxu0 %v305
    %369 = vmatpush1.bf16.msra.mxu0 %v304
    %370 = vmatprep.subr.bf16.mxu0 %v307
    %371 = vmatpush1.bf16.msra.mxu0 %v306
    %372 = vmatprep.subr.bf16.mxu0 %v309
    %373 = vmatpush1.bf16.msra.mxu0 %v308
    %374 = vmatprep.subr.bf16.mxu0 %v311
    %375 = vmatpush1.bf16.msra.mxu0 %v310
    %376 = vmatprep.subr.bf16.mxu0 %v313
    %377 = vmatpush1.bf16.msra.mxu0 %v312
    %378 = vmatprep.subr.bf16.mxu0 %v315
    %379 = vmatpush1.bf16.msra.mxu0 %v314
    %380 = vmatprep.subr.bf16.mxu0 %v317
    %381 = vmatpush1.bf16.msra.mxu0 %v316
    %382 = vmatprep.subr.bf16.mxu0 %v319
    %383 = vmatpush1.bf16.msra.mxu0 %v318
    %384 = vmatprep.subr.bf16.mxu0 %v321
    %385 = vmatpush1.bf16.msra.mxu0 %v320
    %386 = vmatprep.subr.bf16.mxu0 %v323
    %387 = vmatpush1.bf16.msra.mxu0 %v322
    %388 = vmatprep.subr.bf16.mxu0 %v325
    %389 = vmatpush1.bf16.msra.mxu0 %v324
    %390 = vmatprep.mubr.bf16.mxu0 %v153
    %391 = vmatmul.mubr.bf16.gmra.mrb[0].mxu0 %v152
    %v392 = vpop.f32.mrb[0].mxu0
    %v393 = vadd.f32 %v191, %v392
    %v394 = vpop.f32.mrb[0].mxu0
    %v395 = vadd.f32 %v195, %v394
    %v396 = vpop.f32.mrb[0].mxu0
    %v397 = vpop.f32.mrb[0].mxu0
    %398 = vdwg.mxu0
    %v399 = vmax.f32 %v393, 0.0
    %v400 = vmax.f32 %v395, 0.0
    %v401 = vpack.c.bf16 %v399, %v399
    %v402 = vpack.c.bf16 %v400, %v400
    %v403 = vld [vmem:[#allocation8] sm:$0xf]
    %v404 = vld [vmem:[#allocation8 + $0x4] sm:$0xf]
    %v405 = vld [vmem:[#allocation8 + $0x8] sm:$0xf]
    %v406 = vld [vmem:[#allocation8 + $0xc] sm:$0xf]
    %v407 = vld [vmem:[#allocation8 + $0x10] sm:$0xf]
    %v408 = vld [vmem:[#allocation8 + $0x14] sm:$0xf]
    %v409 = vld [vmem:[#allocation8 + $0x18] sm:$0xf]
    %v410 = vld [vmem:[#allocation8 + $0x1c] sm:$0xf]
    %v411 = vld [vmem:[#allocation8 + $0x20] sm:$0xf]
    %v412 = vld [vmem:[#allocation8 + $0x24] sm:$0xf]
    %v413 = vld [vmem:[#allocation8 + $0x28] sm:$0xf]
    %v414 = vld [vmem:[#allocation8 + $0x2c] sm:$0xf]
    %v415 = vld [vmem:[#allocation8 + $0x30] sm:$0xf]
    %v416 = vld [vmem:[#allocation8 + $0x34] sm:$0xf]
    %v417 = vld [vmem:[#allocation8 + $0x38] sm:$0xf]
    %v418 = vld [vmem:[#allocation8 + $0x3c] sm:$0xf]
    %v419 = vld [vmem:[#allocation8 + $0x40] sm:$0xf]
    %v420 = vld [vmem:[#allocation8 + $0x44] sm:$0xf]
    %v421 = vld [vmem:[#allocation8 + $0x48] sm:$0xf]
    %v422 = vld [vmem:[#allocation8 + $0x4c] sm:$0xf]
    %v423 = vld [vmem:[#allocation8 + $0x50] sm:$0xf]
    %v424 = vld [vmem:[#allocation8 + $0x54] sm:$0xf]
    %v425 = vld [vmem:[#allocation8 + $0x58] sm:$0xf]
    %v426 = vld [vmem:[#allocation8 + $0x5c] sm:$0xf]
    %v427 = vld [vmem:[#allocation8 + $0x60] sm:$0xf]
    %v428 = vld [vmem:[#allocation8 + $0x64] sm:$0xf]
    %v429 = vld [vmem:[#allocation8 + $0x68] sm:$0xf]
    %v430 = vld [vmem:[#allocation8 + $0x6c] sm:$0xf]
    %v431 = vld [vmem:[#allocation8 + $0x70] sm:$0xf]
    %v432 = vld [vmem:[#allocation8 + $0x74] sm:$0xf]
    %v433 = vld [vmem:[#allocation8 + $0x78] sm:$0xf]
    %v434 = vld [vmem:[#allocation8 + $0x7c] sm:$0xf]
    %v435 = vld [vmem:[%s6] sm:$0x1]
    %v437 = vlaneseq
    %v438 = vshrl.u32 %v437, 7
    %v439 = vsub.s32 0, %v438
    %v440 = vrot.slane %v435, %v439
    %v474 = vunpack.c.l.b16 %v403
    %v475 = vunpack.c.l.b16 %v404
    %v476 = vunpack.c.l.b16 %v405
    %v477 = vunpack.c.l.b16 %v406
    %v478 = vunpack.c.l.b16 %v407
    %v479 = vunpack.c.l.b16 %v408
    %v480 = vunpack.c.l.b16 %v409
    %v481 = vunpack.c.l.b16 %v410
    %v482 = vunpack.c.l.b16 %v411
    %v483 = vunpack.c.l.b16 %v412
    %v484 = vunpack.c.l.b16 %v413
    %v485 = vunpack.c.l.b16 %v414
    %v486 = vunpack.c.l.b16 %v415
    %v487 = vunpack.c.l.b16 %v416
    %v488 = vunpack.c.l.b16 %v417
    %v489 = vunpack.c.l.b16 %v418
    %v490 = vunpack.c.l.b16 %v419
    %v491 = vunpack.c.l.b16 %v420
    %v492 = vunpack.c.l.b16 %v421
    %v493 = vunpack.c.l.b16 %v422
    %v494 = vunpack.c.l.b16 %v423
    %v495 = vunpack.c.l.b16 %v424
    %v496 = vunpack.c.l.b16 %v425
    %v497 = vunpack.c.l.b16 %v426
    %v498 = vunpack.c.l.b16 %v427
    %v499 = vunpack.c.l.b16 %v428
    %v500 = vunpack.c.l.b16 %v429
    %v501 = vunpack.c.l.b16 %v430
    %v502 = vunpack.c.l.b16 %v431
    %v503 = vunpack.c.l.b16 %v432
    %v504 = vunpack.c.l.b16 %v433
    %v505 = vunpack.c.l.b16 %v434
    %v506 = vpack.c.b16 %v475, %v474
    %v507 = vpack.c.b16 %v477, %v476
    %v508 = vpack.c.b16 %v479, %v478
    %v509 = vpack.c.b16 %v481, %v480
    %v510 = vpack.c.b16 %v483, %v482
    %v511 = vpack.c.b16 %v485, %v484
    %v512 = vpack.c.b16 %v487, %v486
    %v513 = vpack.c.b16 %v489, %v488
    %v514 = vpack.c.b16 %v491, %v490
    %v515 = vpack.c.b16 %v493, %v492
    %v516 = vpack.c.b16 %v495, %v494
    %v517 = vpack.c.b16 %v497, %v496
    %v518 = vpack.c.b16 %v499, %v498
    %v519 = vpack.c.b16 %v501, %v500
    %v520 = vpack.c.b16 %v503, %v502
    %v521 = vpack.c.b16 %v505, %v504
    %538 = vmatprep.subr.bf16.mxu0 0
    %539 = vmatpush1.bf16.msra.mxu0 %v506
    %540 = vmatprep.subr.bf16.mxu0 0
    %541 = vmatpush1.bf16.msra.mxu0 %v507
    %542 = vmatprep.subr.bf16.mxu0 0
    %543 = vmatpush1.bf16.msra.mxu0 %v508
    %544 = vmatprep.subr.bf16.mxu0 0
    %545 = vmatpush1.bf16.msra.mxu0 %v509
    %546 = vmatprep.subr.bf16.mxu0 0
    %547 = vmatpush1.bf16.msra.mxu0 %v510
    %548 = vmatprep.subr.bf16.mxu0 0
    %549 = vmatpush1.bf16.msra.mxu0 %v511
    %550 = vmatprep.subr.bf16.mxu0 0
    %551 = vmatpush1.bf16.msra.mxu0 %v512
    %552 = vmatprep.subr.bf16.mxu0 0
    %553 = vmatpush1.bf16.msra.mxu0 %v513
    %554 = vmatprep.subr.bf16.mxu0 0
    %555 = vmatpush1.bf16.msra.mxu0 %v514
    %556 = vmatprep.subr.bf16.mxu0 0
    %557 = vmatpush1.bf16.msra.mxu0 %v515
    %558 = vmatprep.subr.bf16.mxu0 0
    %559 = vmatpush1.bf16.msra.mxu0 %v516
    %560 = vmatprep.subr.bf16.mxu0 0
    %561 = vmatpush1.bf16.msra.mxu0 %v517
    %562 = vmatprep.subr.bf16.mxu0 0
    %563 = vmatpush1.bf16.msra.mxu0 %v518
    %564 = vmatprep.subr.bf16.mxu0 0
    %565 = vmatpush1.bf16.msra.mxu0 %v519
    %566 = vmatprep.subr.bf16.mxu0 0
    %567 = vmatpush1.bf16.msra.mxu0 %v520
    %568 = vmatprep.subr.bf16.mxu0 0
    %569 = vmatpush1.bf16.msra.mxu0 %v521
    %570 = vmatprep.mubr.bf16.mxu0 %v402
    %571 = vmatmul.mubr.bf16.gmra.mrb[0].mxu0 %v401
    %v572 = vpop.f32.mrb[0].mxu0
    %v573 = vadd.f32 %v440, %v572
    %v574 = vpop.f32.mrb[0].mxu0
    %v575 = vpop.f32.mrb[0].mxu0
    %v576 = vpop.f32.mrb[0].mxu0
    %577 = vdwg.mxu0
    %v578 = vlaneseq
    %v579 = vand.u32 %v578, 127
    %vm580 = vcmp.lt.s32.totalorder %v579, 4
    %v581 = vsel %vm580, %v573, -1e+30
    %582 = vmax.xlane.f32.xlu0 %v581
    %v583 = vpop.xlane.xlu0 %582
    %v584 = vsub.f32 %v581, %v583
    %v585 = vmul.f32 %v584, 1.442695
    %v586 = vpow.pop %v585
    %587 = vadd.xlane.f32.xlu0 %v586
    %v588 = vpop.xlane.xlu0 %587
    %v589 = vrcp.pop %v588
    %v590 = vmul.f32 %v586, %v589
    %591 = vst [vmem:[#allocation10] sm:$0xff] %v590
    // Predicated region
    $region46: #{tpu_custom_call.1} parent=1 // pred_check
      _
    $region47: #{tpu_custom_call.1} parent=1 // pred_check_branch
      %593 = sbr.rel (0) target = $region49
    $region48: #{tpu_custom_call.1} parent=1 // pred_region
      %s595 = ssub.s32 128, 128
      %596 = vsyncadd [#allocation4], %s595
      %s598 = sshll.u32 [#allocation10], 4
      %s599 = int_to_ptr.vmem [resolvable:$true] %s598
      %601 = dma.vmem_to_hbm [thread:$0]  %s599, 128, %s7, [#allocation4]
    $region49: #{tpu_custom_call.1} parent=1 // pred_fallthru
      _
    // Predicated region
    $region50: #{tpu_custom_call.1} parent=1 // pred_check
      _
    $region51: #{tpu_custom_call.1} parent=1 // pred_check_branch
      %603 = sbr.rel (0) target = $region53
    $region52: #{tpu_custom_call.1} parent=1 // pred_region
      %604 = dma.done [#allocation4], 128
    $region53: #{tpu_custom_call.1} parent=1 // pred_fallthru
      _
    %605 = vsyncpa [#allocation3], 1
    %606 = vsyncpa [#allocation6], 1
    %607 = vsyncpa [#allocation9], 1
    %608 = vsyncpa [#allocation4], 1

</llo_original>
